<compile_context>
chip_gen: v6e
topology: v6e:2x2x1
jax: 0.10.0
libtpu: 0.0.40
codegen_flags: <defaults>
</compile_context>

<pallas_src>
import functools

import jax
import jax.numpy as jnp
from jax.experimental import pallas as pl
from jax.experimental.pallas import tpu as pltpu


# ----------------------------------------------------------------------------
# "args" for the synthetic module (small shapes)
# ----------------------------------------------------------------------------
class Args:
    zdim = 8                  # z_size
    hyper_dims = "32-64"      # MLP hidden dims; n_out = 64
    dims = "16-16"            # target-network dims
    input_dim = 3


def output_layer_sizes(dims, input_dim):
    """Out-feature sizes of the `output` ListModule, in order."""
    sizes = []
    for k in range(len(dims)):
        if k == 0:
            sizes.append(input_dim * dims[k])
        else:
            sizes.append(dims[k - 1] * dims[k])
        sizes.extend([dims[k]] * 4)
    sizes.append(dims[-1] * input_dim)
    sizes.extend([input_dim] * 4)
    return sizes


def _round_up(v, m):
    return ((v + m - 1) // m) * m


# ----------------------------------------------------------------------------
# Pallas kernel
# ----------------------------------------------------------------------------
def hyperflow_kernel(layout, x_ref, p_ref, out_ref):
    """layout: static tuple of (row_offset, rows, cols), alternating
    (weight, bias) per layer.  The last (weight, bias) pair is the fused
    output bank (cols == full slab width); earlier pairs are Linear+ReLU
    layers of the hypernet MLP.  Biases are (1, N) rows that broadcast
    across sublanes."""
    n_layers = len(layout) // 2
    h = x_ref[...]
    for i in range(n_layers):
        rw, kw, nw = layout[2 * i]
        rb, _, nb = layout[2 * i + 1]
        w = p_ref[rw:rw + kw, 0:nw]
        b = p_ref[rb:rb + 1, 0:nb]
        # TODO(synk): once batches are large enough to be MXU-bound, switch the
        # fused (last) matmul to a bf16x3 dot algorithm (~f32 accuracy, 2-3x
        # MXU throughput on v6e/v7x); at tiny B the call is latency-bound so
        # plain f32 is kept.
        h = jnp.dot(h, w, preferred_element_type=jnp.float32) + b
        if i < n_layers - 1:
            h = jnp.maximum(h, 0.0)          # ReLU between MLP layers only
    out_ref[...] = h


# ----------------------------------------------------------------------------
# One-time parameter preprocessing (weights only -- cache the result)
# ----------------------------------------------------------------------------
def prepare_params(mlp_params, w_out, b_out):
    """Fold, pad, and pack the parameters once.

    * Fold the activation-free last MLP Linear into the output bank:
        W_fused = W_last @ W_out,   b_fused = b_last @ W_out + b_out.
    * Lane-pad the fused width to a multiple of 128 (492 -> 512).
    * Pack every weight / bias into one f32 slab at 8-aligned row offsets.

    Returns (slab, layout, total_out, total_pad); `layout` is a static
    (hashable) tuple used to carve the slab inside the kernel.
    """
    w_last, b_last = mlp_params[-1]                 # (d_prev, n_out), (1, n_out)
    w_fused = w_last @ w_out                        # (d_prev, total_out)
    b_fused = b_last @ w_out + b_out                # (1, total_out)
    pre_params = mlp_params[:-1]                    # Linear+ReLU layers only

    total_out = w_out.shape[1]
    total_pad = _round_up(max(total_out, 128), 128)

    pieces = list(pre_params) + [(w_fused, b_fused)]
    layout, entries = [], []
    row = 0
    for li, (w, b) in enumerate(pieces):
        is_fused = (li == len(pieces) - 1)
        n_cols = total_pad if is_fused else w.shape[1]
        layout.append((row, w.shape[0], n_cols))
        entries.append((row, w))
        row = _round_up(row + w.shape[0], 8)
        layout.append((row, 1, n_cols))
        entries.append((row, b))
        row = _round_up(row + 1, 8)

    slab = jnp.zeros((row, total_pad), jnp.float32)
    for r0, arr in entries:
        slab = slab.at[r0:r0 + arr.shape[0], 0:arr.shape[1]].set(arr)
    return slab, tuple(layout), total_out, total_pad


# ----------------------------------------------------------------------------
# Jitted forward: pad x -> pallas_call (batch-tiled grid) -> un-pad
# ----------------------------------------------------------------------------
@functools.partial(
    jax.jit, static_argnames=("layout", "total_out", "total_pad", "b_tile"))
def hyperflow_forward(x, slab, *, layout, total_out, total_pad, b_tile=256):
    """x: (B, z_size) f32.  slab/layout from prepare_params.  -> (B, total_out)."""
    B, z = x.shape

    # Batch tile (sublane dim): multiple of 8.  At the demo batch (B=2) this
    # collapses to one 8-row tile and grid=(1,).
    b_tile = min(b_tile, _round_up(max(B, 8), 8))
    B_pad = _round_up(max(B, 8), b_tile)
    x_pad = jnp.pad(x, ((0, B_pad - B), (0, 0)))

    kernel = functools.partial(hyperflow_kernel, layout)

    out_pad = pl.pallas_call(
        kernel,
        out_shape=jax.ShapeDtypeStruct((B_pad, total_pad), jnp.float32),
        grid=(B_pad // b_tile,),
        in_specs=[
            # x: one batch tile per grid step.
            pl.BlockSpec((b_tile, z), lambda i: (i, 0)),
            # weight slab: constant block index -> fetched once, VMEM-resident.
            pl.BlockSpec(slab.shape, lambda i: (0, 0)),
        ],
        out_specs=pl.BlockSpec((b_tile, total_pad), lambda i: (i, 0)),
        # Parallel batch axis shards across v7x's two TensorCores (no effect
        # on single-TC v5e/v6e).
        compiler_params=pltpu.CompilerParams(
            dimension_semantics=("parallel",)),
    )(x_pad, slab)

    # Zero-padded batch rows compute relu(b0)-derived garbage; the slice below
    # drops them.  Keep it if the padded output is ever reused.
    return out_pad[:B, :total_out]


# ----------------------------------------------------------------------------
# Deterministic parameter init (PyTorch-Linear-style uniform bounds)
# ----------------------------------------------------------------------------
def init_linear(key, fan_in, fan_out):
    kw, kb = jax.random.split(key)
    bound = 1.0 / jnp.sqrt(jnp.float32(fan_in))
    w = jax.random.uniform(kw, (fan_in, fan_out), jnp.float32, -bound, bound)
    b = jax.random.uniform(kb, (1, fan_out), jnp.float32, -bound, bound)
    return w, b


def build_params(args, key):
    hyper_dims = tuple(map(int, args.hyper_dims.split("-")))
    n_out = hyper_dims[-1]
    tgt_dims = tuple(map(int, args.dims.split("-")))

    # MLP ("self.model")
    mlp_params = []
    in_f = args.zdim
    for d in hyper_dims:
        key, sub = jax.random.split(key)
        mlp_params.append(init_linear(sub, in_f, d))
        in_f = d

    # Output bank ("self.output"): all Linears concatenated along out-features.
    sizes = output_layer_sizes(tgt_dims, args.input_dim)
    ws, bs = [], []
    for s in sizes:
        key, sub = jax.random.split(key)
        w, b = init_linear(sub, n_out, s)
        ws.append(w)
        bs.append(b)
    w_out = jnp.concatenate(ws, axis=1)   # (n_out, total_out)
    b_out = jnp.concatenate(bs, axis=1)   # (1, total_out)
    return mlp_params, w_out, b_out


def reference_forward(x, mlp_params, w_out, b_out):
    h = x
    for i, (w, b) in enumerate(mlp_params):
        h = h @ w + b
        if i < len(mlp_params) - 1:
            h = jnp.maximum(h, 0.0)
    return h @ w_out + b_out


if __name__ == "__main__":
    args = Args()
    key = jax.random.PRNGKey(0)
    key, xk = jax.random.split(key)

    B = 2
    x = jax.random.normal(xk, (B, args.zdim), jnp.float32)

    mlp_params, w_out, b_out = build_params(args, key)

    # One-time preprocessing (depends on weights only) -- outside the hot path.
    slab, layout, total_out, total_pad = prepare_params(mlp_params, w_out, b_out)
    slab = jax.block_until_ready(slab)

    out = hyperflow_forward(
        x, slab, layout=layout, total_out=total_out, total_pad=total_pad)
    out = jax.block_until_ready(out)

    ref = reference_forward(x, mlp_params, w_out, b_out)
    assert out.shape == ref.shape == (B, total_out)
    # The fold of the last MLP Linear into the output bank is exact
    # algebraically; only float-rounding-order differences remain.
    assert jnp.allclose(out, ref, atol=1e-4, rtol=1e-3)

    print("KERNEL_OK")
</pallas_src>

<mosaic_0001>
module attributes {stable_mosaic.version = 11 : i64} {
  func.func @hyperflow_kernel(%arg0: i32, %arg1: memref<8x8xf32, #tpu.memory_space<vmem>>, %arg2: memref<56x512xf32, #tpu.memory_space<vmem>>, %arg3: memref<8x512xf32, #tpu.memory_space<vmem>>) attributes {dimension_semantics = [#tpu.dimension_semantics<parallel>], iteration_bounds = array<i64: 1>, scalar_prefetch = 0 : i64, scratch_operands = 0 : i64, tpu.core_type = #tpu.core_type<tc>, window_params = [{transform_indices = @transform_0, window_bounds = array<i64: 8, 8>}, {pipeline_mode = #tpu.pipeline_mode<synchronous>, transform_indices = @transform_1, window_bounds = array<i64: 56, 512>}, {transform_indices = @transform_2, window_bounds = array<i64: 8, 512>}]} {
    %c0 = arith.constant 0 : index
    %c0_0 = arith.constant 0 : index
    %0 = vector.load %arg1[%c0, %c0_0] : memref<8x8xf32, #tpu.memory_space<vmem>>, vector<8x8xf32>
    %c0_1 = arith.constant 0 : index
    %c0_2 = arith.constant 0 : index
    %1 = vector.load %arg2[%c0_1, %c0_2] : memref<56x512xf32, #tpu.memory_space<vmem>>, vector<8x32xf32>
    %c8 = arith.constant 8 : index
    %c0_3 = arith.constant 0 : index
    %2 = vector.load %arg2[%c8, %c0_3] : memref<56x512xf32, #tpu.memory_space<vmem>>, vector<1x32xf32>
    %cst = arith.constant dense<0.000000e+00> : vector<8x32xf32>
    %3 = tpu.matmul %0, %1, %cst {dimension_numbers = #tpu.dot_dimension_numbers<[1], [0], [0], [1], [0, 0, 1, 1], [], []>} : vector<8x8xf32>, vector<8x32xf32>, vector<8x32xf32> -> vector<8x32xf32>
    %4 = vector.broadcast %2 : vector<1x32xf32> to vector<8x32xf32>
    %5 = arith.addf %3, %4 : vector<8x32xf32>
    %cst_4 = arith.constant 0.000000e+00 : f32
    %6 = vector.broadcast %cst_4 : f32 to vector<8x32xf32>
    %7 = arith.maximumf %5, %6 : vector<8x32xf32>
    %c16 = arith.constant 16 : index
    %c0_5 = arith.constant 0 : index
    %8 = vector.load %arg2[%c16, %c0_5] : memref<56x512xf32, #tpu.memory_space<vmem>>, vector<32x512xf32>
    %c48 = arith.constant 48 : index
    %c0_6 = arith.constant 0 : index
    %9 = vector.load %arg2[%c48, %c0_6] : memref<56x512xf32, #tpu.memory_space<vmem>>, vector<1x512xf32>
    %cst_7 = arith.constant dense<0.000000e+00> : vector<8x512xf32>
    %10 = tpu.matmul %7, %8, %cst_7 {dimension_numbers = #tpu.dot_dimension_numbers<[1], [0], [0], [1], [0, 0, 1, 1], [], []>} : vector<8x32xf32>, vector<32x512xf32>, vector<8x512xf32> -> vector<8x512xf32>
    %11 = vector.broadcast %9 : vector<1x512xf32> to vector<8x512xf32>
    %12 = arith.addf %10, %11 : vector<8x512xf32>
    %c0_8 = arith.constant 0 : index
    %c0_9 = arith.constant 0 : index
    %13 = vector.load %arg3[%c0_8, %c0_9] : memref<8x512xf32, #tpu.memory_space<vmem>>, vector<8x512xf32>
    tpu.vector_store %arg3[%c0_8, %c0_9], %12 {strides = array<i32>} : memref<8x512xf32, #tpu.memory_space<vmem>>, vector<8x512xf32>,
    return
  }
  func.func @transform_0(%arg0: i32) -> (i32, i32) {
    %c0_i32 = arith.constant 0 : i32
    %c0_i32_0 = arith.constant 0 : i32
    return %arg0, %c0_i32 : i32, i32
  }
  func.func @transform_1(%arg0: i32) -> (i32, i32) {
    %c0_i32 = arith.constant 0 : i32
    %c0_i32_0 = arith.constant 0 : i32
    %c0_i32_1 = arith.constant 0 : i32
    return %c0_i32, %c0_i32_0 : i32, i32
  }
  func.func @transform_2(%arg0: i32) -> (i32, i32) {
    %c0_i32 = arith.constant 0 : i32
    %c0_i32_0 = arith.constant 0 : i32
    return %arg0, %c0_i32 : i32, i32
  }
}

</mosaic_0001>

<llo_original>
// kernel: hyperflow_forward.1
$region0: #{hyperflow_forward.1}
  #allocation0 [shape = 'u32[]', space=smem, size = 0x4, offset = 0x4, fixed_abs, tag = 'smem constant byte address 0x4 - core index']
  #allocation1 [shape = 'u32[144,128]{1,0:T(1,128)}', space=vmem, size = 0x12000, scoped, tag = 'internal scratch']
  %s0 = inlined_call_operand.vmem [shape: f32[8,8], index: 0, kind: input, shape index: {}]
  %s1 = inlined_call_operand.hbm [shape: f32[56,512], index: 1, kind: input, shape index: {}]
  %s2 = inlined_call_operand.vmem [shape: f32[8,512], index: 2, kind: output, shape index: {}]
  %s3 = sld [smem:[#allocation0]]
  $region22: #{hyperflow_forward.1} parent=0
    _
  %s5 = ssub.s32 1, %s3
  %s6 = scalar_select 0, %s5, %s3
  $region1: #{hyperflow_forward.1} parent=0
    #allocation2 [shape = 'u8[114688]{0}', space=vmem, size = 0x1c000, scoped, tag = 'input window, operand 1, single buffered']
    #allocation3 [shape = 's32[1]{0}', space=sflag, size = 0x4, scoped, tag = 'scoped memory for hyperflow_forward.1']
    %7 = vsyncpa [#allocation3], 0
    // Predicated region
    $region2: #{hyperflow_forward.1} parent=1 // pred_check
      _
    $region3: #{hyperflow_forward.1} parent=1 // pred_check_branch
      %9 = sbr.rel (0) target = $region5
    $region4: #{hyperflow_forward.1} parent=1 // pred_region
      _
    $region5: #{hyperflow_forward.1} parent=1 // pred_fallthru
      _
    // Predicated region
    $region6: #{hyperflow_forward.1} parent=1 // pred_check
      _
    $region7: #{hyperflow_forward.1} parent=1 // pred_check_branch
      %11 = sbr.rel (0) target = $region9
    $region8: #{hyperflow_forward.1} parent=1 // pred_region
      %s13 = ssub.s32 3584, 3584
      %14 = vsyncadd [#allocation3], %s13
      %s15 = sshll.u32 [#allocation2], 4
      %s16 = int_to_ptr.vmem [resolvable:$true] %s15
      %21 = dma.hbm_to_vmem [thread:$0]  %s1, 3584, %s16, [#allocation3], 512, 512, 32
    $region9: #{hyperflow_forward.1} parent=1 // pred_fallthru
      _
    // Predicated region
    $region10: #{hyperflow_forward.1} parent=1 // pred_check
      _
    $region11: #{hyperflow_forward.1} parent=1 // pred_check_branch
      %23 = sbr.rel (0) target = $region13
    $region12: #{hyperflow_forward.1} parent=1 // pred_region
      %24 = dma.done [#allocation3], 3584
    $region13: #{hyperflow_forward.1} parent=1 // pred_fallthru
      _
    %v25 = vld [vmem:[%s0] sm:$0xff]
    %v26 = vld [vmem:[#allocation2] sm:$0xff]
    %v27 = vld [vmem:[#allocation2 + $0x20] ss:$0 sm:$0xff]
    %vm28 = vcmask 64512
    %v30 = vsel %vm28, %v25, 0
    %32 = vmatprep.subr.mxu0 0.0
    %33 = vmatpush1.msra.mxu0 0.0
    %34 = vmatprep.subr.mxu0 0.0
    %35 = vmatpush1.msra.mxu0 0.0
    %36 = vmatprep.subr.mxu0 0.0
    %37 = vmatpush1.msra.mxu0 0.0
    %38 = vmatprep.subr.mxu0 0.0
    %39 = vmatpush1.msra.mxu0 0.0
    %40 = vmatprep.subr.mxu0 0.0
    %41 = vmatpush1.msra.mxu0 0.0
    %42 = vmatprep.subr.mxu0 0.0
    %43 = vmatpush1.msra.mxu0 0.0
    %44 = vmatprep.subr.mxu0 0.0
    %45 = vmatpush1.msra.mxu0 0.0
    %46 = vmatprep.subr.mxu0 0.0
    %47 = vmatpush1.msra.mxu0 0.0
    %48 = vmatprep.subr.mxu0 0.0
    %49 = vmatpush1.msra.mxu0 0.0
    %50 = vmatprep.subr.mxu0 0.0
    %51 = vmatpush1.msra.mxu0 0.0
    %52 = vmatprep.subr.mxu0 0.0
    %53 = vmatpush1.msra.mxu0 0.0
    %54 = vmatprep.subr.mxu0 0.0
    %55 = vmatpush1.msra.mxu0 0.0
    %56 = vmatprep.subr.mxu0 0.0
    %57 = vmatpush1.msra.mxu0 0.0
    %58 = vmatprep.subr.mxu0 0.0
    %59 = vmatpush1.msra.mxu0 0.0
    %60 = vmatprep.subr.mxu0 0.0
    %61 = vmatpush1.msra.mxu0 0.0
    %62 = vmatprep.subr.mxu0 0.0
    %63 = vmatpush1.msra.mxu0 %v26
    %64 = vmatprep.subr.mxu0 0.0
    %65 = vmatpush2.msra.mxu0 0.0
    %66 = vmatprep.subr.mxu0 0.0
    %67 = vmatpush2.msra.mxu0 0.0
    %68 = vmatprep.subr.mxu0 0.0
    %69 = vmatpush2.msra.mxu0 0.0
    %70 = vmatprep.subr.mxu0 0.0
    %71 = vmatpush2.msra.mxu0 0.0
    %72 = vmatprep.subr.mxu0 0.0
    %73 = vmatpush2.msra.mxu0 0.0
    %74 = vmatprep.subr.mxu0 0.0
    %75 = vmatpush2.msra.mxu0 0.0
    %76 = vmatprep.subr.mxu0 0.0
    %77 = vmatpush2.msra.mxu0 0.0
    %78 = vmatprep.subr.mxu0 0.0
    %79 = vmatpush2.msra.mxu0 0.0
    %80 = vmatprep.subr.mxu0 0.0
    %81 = vmatpush2.msra.mxu0 0.0
    %82 = vmatprep.subr.mxu0 0.0
    %83 = vmatpush2.msra.mxu0 0.0
    %84 = vmatprep.subr.mxu0 0.0
    %85 = vmatpush2.msra.mxu0 0.0
    %86 = vmatprep.subr.mxu0 0.0
    %87 = vmatpush2.msra.mxu0 0.0
    %88 = vmatprep.subr.mxu0 0.0
    %89 = vmatpush2.msra.mxu0 0.0
    %90 = vmatprep.subr.mxu0 0.0
    %91 = vmatpush2.msra.mxu0 0.0
    %92 = vmatprep.subr.mxu0 0.0
    %93 = vmatpush2.msra.mxu0 0.0
    %94 = vmatprep.subr.mxu0 0.0
    %95 = vmatpush2.msra.mxu0 0.0
    %96 = vmatprep.mubr.f32.mxu0 0.0
    %97 = vmatmul.mubr.f32.gmra.mxu0 %v30
    %v98 = vpop.f32.mrf.mxu0
    %v99 = vadd.f32 %v27, %v98
    %v100 = vpop.f32.mrf.mxu0
    %101 = vdwg.mxu0
    %v102 = vmax.f32 %v99, 0.0
    %v103 = vld [vmem:[#allocation2 + $0x40] sm:$0xff]
    %v104 = vld [vmem:[#allocation2 + $0x48] sm:$0xff]
    %v105 = vld [vmem:[#allocation2 + $0x50] sm:$0xff]
    %v106 = vld [vmem:[#allocation2 + $0x58] sm:$0xff]
    %v107 = vld [vmem:[#allocation2 + $0x60] sm:$0xff]
    %v108 = vld [vmem:[#allocation2 + $0x68] sm:$0xff]
    %v109 = vld [vmem:[#allocation2 + $0x70] sm:$0xff]
    %v110 = vld [vmem:[#allocation2 + $0x78] sm:$0xff]
    %v111 = vld [vmem:[#allocation2 + $0x80] sm:$0xff]
    %v112 = vld [vmem:[#allocation2 + $0x88] sm:$0xff]
    %v113 = vld [vmem:[#allocation2 + $0x90] sm:$0xff]
    %v114 = vld [vmem:[#allocation2 + $0x98] sm:$0xff]
    %v115 = vld [vmem:[#allocation2 + $0xa0] sm:$0xff]
    %v116 = vld [vmem:[#allocation2 + $0xa8] sm:$0xff]
    %v117 = vld [vmem:[#allocation2 + $0xb0] sm:$0xff]
    %v118 = vld [vmem:[#allocation2 + $0xb8] sm:$0xff]
    %s119 = scalar_lea.vmem [#allocation2], 192
    %v120 = vld [vmem:[%s119] ss:$8 sm:$0xf]
    %v122 = vlaneseq
    %v123 = vshrl.u32 %v122, 7
    %v124 = vsub.s32 0, %v123
    %v125 = vrot.slane %v120, %v124
    %v126 = vlaneseq
    %v127 = vshrl.u32 %v126, 7
    %v128 = vsub.s32 1, %v127
    %v129 = vrot.slane %v120, %v128
    %v130 = vlaneseq
    %v131 = vshrl.u32 %v130, 7
    %v132 = vsub.s32 2, %v131
    %v133 = vrot.slane %v120, %v132
    %v134 = vlaneseq
    %v135 = vshrl.u32 %v134, 7
    %v136 = vsub.s32 3, %v135
    %v137 = vrot.slane %v120, %v136
    %vm142 = vcmask 261120
    %v144 = vsel %vm142, %v102, 0
    %146 = vmatprep.subr.mxu0 0.0
    %147 = vmatpush1.msra.mxu0 0.0
    %148 = vmatprep.subr.mxu0 0.0
    %149 = vmatpush1.msra.mxu0 0.0
    %150 = vmatprep.subr.mxu0 0.0
    %151 = vmatpush1.msra.mxu0 0.0
    %152 = vmatprep.subr.mxu0 0.0
    %153 = vmatpush1.msra.mxu0 0.0
    %154 = vmatprep.subr.mxu0 0.0
    %155 = vmatpush1.msra.mxu0 0.0
    %156 = vmatprep.subr.mxu0 0.0
    %157 = vmatpush1.msra.mxu0 0.0
    %158 = vmatprep.subr.mxu0 0.0
    %159 = vmatpush1.msra.mxu0 0.0
    %160 = vmatprep.subr.mxu0 0.0
    %161 = vmatpush1.msra.mxu0 0.0
    %162 = vmatprep.subr.mxu0 0.0
    %163 = vmatpush1.msra.mxu0 0.0
    %164 = vmatprep.subr.mxu0 0.0
    %165 = vmatpush1.msra.mxu0 0.0
    %166 = vmatprep.subr.mxu0 0.0
    %167 = vmatpush1.msra.mxu0 0.0
    %168 = vmatprep.subr.mxu0 0.0
    %169 = vmatpush1.msra.mxu0 0.0
    %170 = vmatprep.subr.mxu0 %v116
    %171 = vmatpush1.msra.mxu0 %v115
    %172 = vmatprep.subr.mxu0 %v112
    %173 = vmatpush1.msra.mxu0 %v111
    %174 = vmatprep.subr.mxu0 %v108
    %175 = vmatpush1.msra.mxu0 %v107
    %176 = vmatprep.subr.mxu0 %v104
    %177 = vmatpush1.msra.mxu0 %v103
    %178 = vmatprep.subr.mxu0 0.0
    %179 = vmatpush2.msra.mxu0 0.0
    %180 = vmatprep.subr.mxu0 0.0
    %181 = vmatpush2.msra.mxu0 0.0
    %182 = vmatprep.subr.mxu0 0.0
    %183 = vmatpush2.msra.mxu0 0.0
    %184 = vmatprep.subr.mxu0 0.0
    %185 = vmatpush2.msra.mxu0 0.0
    %186 = vmatprep.subr.mxu0 0.0
    %187 = vmatpush2.msra.mxu0 0.0
    %188 = vmatprep.subr.mxu0 0.0
    %189 = vmatpush2.msra.mxu0 0.0
    %190 = vmatprep.subr.mxu0 0.0
    %191 = vmatpush2.msra.mxu0 0.0
    %192 = vmatprep.subr.mxu0 0.0
    %193 = vmatpush2.msra.mxu0 0.0
    %194 = vmatprep.subr.mxu0 0.0
    %195 = vmatpush2.msra.mxu0 0.0
    %196 = vmatprep.subr.mxu0 0.0
    %197 = vmatpush2.msra.mxu0 0.0
    %198 = vmatprep.subr.mxu0 0.0
    %199 = vmatpush2.msra.mxu0 0.0
    %200 = vmatprep.subr.mxu0 0.0
    %201 = vmatpush2.msra.mxu0 0.0
    %202 = vmatprep.subr.mxu0 0.0
    %203 = vmatpush2.msra.mxu0 0.0
    %204 = vmatprep.subr.mxu0 0.0
    %205 = vmatpush2.msra.mxu0 0.0
    %206 = vmatprep.subr.mxu0 0.0
    %207 = vmatpush2.msra.mxu0 0.0
    %208 = vmatprep.subr.mxu0 0.0
    %209 = vmatpush2.msra.mxu0 0.0
    %210 = vmatprep.mubr.f32.mxu0 0.0
    %211 = vmatmul.mubr.f32.gmra.mxu0 %v144
    %v212 = vpop.f32.mrf.mxu0
    %v213 = vadd.f32 %v125, %v212
    %v214 = vpop.f32.mrf.mxu0
    %v215 = vadd.f32 %v129, %v214
    %216 = vdwg.mxu0
    %217 = vmatprep.subr.mxu0 0.0
    %218 = vmatpush1.msra.mxu0 0.0
    %219 = vmatprep.subr.mxu0 0.0
    %220 = vmatpush1.msra.mxu0 0.0
    %221 = vmatprep.subr.mxu0 0.0
    %222 = vmatpush1.msra.mxu0 0.0
    %223 = vmatprep.subr.mxu0 0.0
    %224 = vmatpush1.msra.mxu0 0.0
    %225 = vmatprep.subr.mxu0 0.0
    %226 = vmatpush1.msra.mxu0 0.0
    %227 = vmatprep.subr.mxu0 0.0
    %228 = vmatpush1.msra.mxu0 0.0
    %229 = vmatprep.subr.mxu0 0.0
    %230 = vmatpush1.msra.mxu0 0.0
    %231 = vmatprep.subr.mxu0 0.0
    %232 = vmatpush1.msra.mxu0 0.0
    %233 = vmatprep.subr.mxu0 0.0
    %234 = vmatpush1.msra.mxu0 0.0
    %235 = vmatprep.subr.mxu0 0.0
    %236 = vmatpush1.msra.mxu0 0.0
    %237 = vmatprep.subr.mxu0 0.0
    %238 = vmatpush1.msra.mxu0 0.0
    %239 = vmatprep.subr.mxu0 0.0
    %240 = vmatpush1.msra.mxu0 0.0
    %241 = vmatprep.subr.mxu0 %v118
    %242 = vmatpush1.msra.mxu0 %v117
    %243 = vmatprep.subr.mxu0 %v114
    %244 = vmatpush1.msra.mxu0 %v113
    %245 = vmatprep.subr.mxu0 %v110
    %246 = vmatpush1.msra.mxu0 %v109
    %247 = vmatprep.subr.mxu0 %v106
    %248 = vmatpush1.msra.mxu0 %v105
    %249 = vmatprep.subr.mxu0 0.0
    %250 = vmatpush2.msra.mxu0 0.0
    %251 = vmatprep.subr.mxu0 0.0
    %252 = vmatpush2.msra.mxu0 0.0
    %253 = vmatprep.subr.mxu0 0.0
    %254 = vmatpush2.msra.mxu0 0.0
    %255 = vmatprep.subr.mxu0 0.0
    %256 = vmatpush2.msra.mxu0 0.0
    %257 = vmatprep.subr.mxu0 0.0
    %258 = vmatpush2.msra.mxu0 0.0
    %259 = vmatprep.subr.mxu0 0.0
    %260 = vmatpush2.msra.mxu0 0.0
    %261 = vmatprep.subr.mxu0 0.0
    %262 = vmatpush2.msra.mxu0 0.0
    %263 = vmatprep.subr.mxu0 0.0
    %264 = vmatpush2.msra.mxu0 0.0
    %265 = vmatprep.subr.mxu0 0.0
    %266 = vmatpush2.msra.mxu0 0.0
    %267 = vmatprep.subr.mxu0 0.0
    %268 = vmatpush2.msra.mxu0 0.0
    %269 = vmatprep.subr.mxu0 0.0
    %270 = vmatpush2.msra.mxu0 0.0
    %271 = vmatprep.subr.mxu0 0.0
    %272 = vmatpush2.msra.mxu0 0.0
    %273 = vmatprep.subr.mxu0 0.0
    %274 = vmatpush2.msra.mxu0 0.0
    %275 = vmatprep.subr.mxu0 0.0
    %276 = vmatpush2.msra.mxu0 0.0
    %277 = vmatprep.subr.mxu0 0.0
    %278 = vmatpush2.msra.mxu0 0.0
    %279 = vmatprep.subr.mxu0 0.0
    %280 = vmatpush2.msra.mxu0 0.0
    %281 = vmatprep.mubr.f32.mxu0 0.0
    %282 = vmatmul.mubr.f32.gmra.mxu0 %v144
    %v283 = vpop.f32.mrf.mxu0
    %v284 = vadd.f32 %v133, %v283
    %v285 = vpop.f32.mrf.mxu0
    %v286 = vadd.f32 %v137, %v285
    %287 = vdwg.mxu0
    %288 = vst [vmem:[%s2] sm:$0xff] %v213
    %289 = vst [vmem:[%s2 + $0x8] sm:$0xff] %v215
    %290 = vst [vmem:[%s2 + $0x10] sm:$0xff] %v284
    %291 = vst [vmem:[%s2 + $0x18] sm:$0xff] %v286
    // Predicated region
    $region14: #{hyperflow_forward.1} parent=1 // pred_check
      _
    $region15: #{hyperflow_forward.1} parent=1 // pred_check_branch
      %293 = sbr.rel (0) target = $region17
    $region16: #{hyperflow_forward.1} parent=1 // pred_region
      _
    $region17: #{hyperflow_forward.1} parent=1 // pred_fallthru
      _
    // Predicated region
    $region18: #{hyperflow_forward.1} parent=1 // pred_check
      _
    $region19: #{hyperflow_forward.1} parent=1 // pred_check_branch
      %295 = sbr.rel (0) target = $region21
    $region20: #{hyperflow_forward.1} parent=1 // pred_region
      _
    $region21: #{hyperflow_forward.1} parent=1 // pred_fallthru
      _
    %296 = vsyncpa [#allocation3], 1

</llo_original>
